<compile_context>
chip_gen: v7x
topology: tpu7x:2x2x1
jax: 0.10.0
libtpu: 0.0.40
codegen_flags: <defaults>
</compile_context>

<pallas_src>
import jax
import jax.numpy as jnp
from jax.experimental import pallas as pl
from jax.experimental.pallas import tpu as pltpu


def _round_up(x, m):
    return (x + m - 1) // m * m


def _make_kernel(w_img, c_mid_p, c_out_p):
    """Fused (conv3x3 + folded-BN + ReLU) x 2 over one lane block of whole images."""

    def kernel(x_ref, m_ref, w1_ref, b1_ref, w2_ref, b2_ref, o_ref, y1_ref):
        lanes = x_ref.shape[-1]
        rm_up = m_ref[0]          # (1, lanes): source row r-1 valid (dy = -1)
        rm_dn = m_ref[1]          # (1, lanes): source row r+1 valid (dy = +1)
        cm_lf = m_ref[2]          # (1, lanes): source col c-1 valid (dx = -1)
        cm_rt = m_ref[3]          # (1, lanes): source col c+1 valid (dx = +1)

        def conv3x3_bn_relu(x, w_ref, b_ref, n_out):
            # dy-stacked input (3*C, lanes): 2 XLU rolls + 2 VPU mask-muls (f32),
            # then cast once to bf16 for the MXU.
            up = pltpu.roll(x, w_img, axis=1) * rm_up            # reads pixel p - W
            dn = pltpu.roll(x, lanes - w_img, axis=1) * rm_dn    # reads pixel p + W
            xs = jnp.concatenate([up, x, dn], axis=0).astype(jnp.bfloat16)
            # Single stacked MXU matmul: (3*n_out, 3*C) @ (3*C, lanes), f32 acc.
            p_all = jnp.dot(w_ref[...], xs, preferred_element_type=jnp.float32)
            p_lf = p_all[:n_out]                  # dx = -1 taps
            p_ct = p_all[n_out:2 * n_out]         # dx =  0 taps
            p_rt = p_all[2 * n_out:]              # dx = +1 taps
            # dx handled on the partial outputs (roll commutes with the channel
            # contraction): 2 rolls + 2 mask-muls on (n_out, lanes), all f32.
            acc = p_ct
            acc = acc + pltpu.roll(p_lf, 1, axis=1) * cm_lf            # reads p - 1
            acc = acc + pltpu.roll(p_rt, lanes - 1, axis=1) * cm_rt    # reads p + 1
            # Folded-BN bias + ReLU (f32 elementwise).
            return jnp.maximum(acc + b_ref[...], 0.0)

        # Stage the intermediate activation in VMEM scratch (bounds vreg pressure).
        y1_ref[...] = conv3x3_bn_relu(x_ref[...], w1_ref, b1_ref, c_mid_p)
        y2 = conv3x3_bn_relu(y1_ref[...], w2_ref, b2_ref, c_out_p)
        o_ref[...] = y2.astype(o_ref.dtype)

    return kernel


def fold_bn_into_conv(w, b, gamma, beta, mean, var, eps=1e-5):
    """Fold eval-mode BatchNorm2d into the preceding Conv2d."""
    scale = gamma / jnp.sqrt(var + eps)
    w_eff = w * scale[:, None, None, None]
    b_eff = (b - mean) * scale + beta
    return w_eff, b_eff


def _stack_weights(w_eff, c_in_p, c_out_p):
    """(C_out, C_in, 3, 3) -> bf16 (3*C_out_p, 3*C_in_p) tap-stacked matrix.
    Row block a corresponds to dx = a-1, column block b to dy = b-1."""
    c_out, c_in = w_eff.shape[:2]
    w_pad = jnp.zeros((c_out_p, c_in_p, 3, 3), w_eff.dtype)
    w_pad = w_pad.at[:c_out, :c_in].set(w_eff)
    w_stk = jnp.transpose(w_pad, (3, 0, 2, 1)).reshape(3 * c_out_p, 3 * c_in_p)
    return w_stk.astype(jnp.bfloat16)


def _pad_bias(b_eff, c_out_p):
    return jnp.zeros((c_out_p, 1), jnp.float32).at[:b_eff.shape[0], 0].set(
        b_eff.astype(jnp.float32))


def _border_masks(h, w, s_pad):
    """Per-image validity masks over the (lane-padded) flattened spatial axis."""
    p = jnp.arange(s_pad)
    hh = p // w
    ww = p % w
    in_img = p < h * w
    rm_up = in_img & (hh >= 1)          # source row r-1 exists
    rm_dn = in_img & (hh <= h - 2)      # source row r+1 exists
    cm_lf = in_img & (ww >= 1)          # source col c-1 exists
    cm_rt = in_img & (ww <= w - 2)      # source col c+1 exists
    return jnp.stack([rm_up, rm_dn, cm_lf, cm_rt]).astype(jnp.float32)   # (4, s_pad)


def _pick_images_per_block(batch, s_pad, c_in_p, c_mid_p, c_out_p, vmem_limit):
    """How many whole images to fold onto the lane axis per grid step."""
    # Rough f32 working set per image: double-buffered x/out blocks, the tap
    # stacks + partial outputs of both convs, and the resident y1 scratch.
    per_img = 4 * s_pad * (2 * c_in_p + 3 * c_in_p + 2 * c_mid_p + 3 * c_mid_p
                           + 2 * c_out_p + 3 * c_out_p)
    bt = max(1, min(batch, (vmem_limit // 2) // max(per_img, 1)))
    if s_pad < 2048:                       # ~16 lane tiles per step is plenty
        bt = min(bt, max(1, 2048 // s_pad))
    while batch % bt:
        bt -= 1
    # Keep >=2 grid steps when the batch allows it (v7x megacore sharding).
    if batch > 1 and batch // bt < 2:
        bt = max(1, bt // 2)
        while batch % bt:
            bt -= 1
    return bt


def double_conv(x_nchw, params, *, eps=1e-5):
    """Forward pass of DoubleConv in NCHW, matching PyTorch (eval-mode BN)."""
    B, C_in, H, W = x_nchw.shape
    S = H * W
    S_pad = _round_up(S, 128)                               # lane-dense output
    C_mid = params["w1"].shape[0]
    C_out = params["w2"].shape[0]
    C_in_p, C_mid_p, C_out_p = (_round_up(c, 8) for c in (C_in, C_mid, C_out))

    # Fold eval-mode BN into the convs; build bf16 tap-stacked weight matrices.
    w1_eff, b1_eff = fold_bn_into_conv(params["w1"], params["b1"], params["gamma1"],
                                       params["beta1"], params["mean1"],
                                       params["var1"], eps)
    w2_eff, b2_eff = fold_bn_into_conv(params["w2"], params["b2"], params["gamma2"],
                                       params["beta2"], params["mean2"],
                                       params["var2"], eps)
    w1_stk = _stack_weights(w1_eff, C_in_p, C_mid_p)        # (3*C_mid_p, 3*C_in_p) bf16
    w2_stk = _stack_weights(w2_eff, C_mid_p, C_out_p)       # (3*C_out_p, 3*C_mid_p) bf16
    b1_col = _pad_bias(b1_eff, C_mid_p)
    b2_col = _pad_bias(b2_eff, C_out_p)

    # Per-generation VMEM budget: ~48 MiB on v7x (64 MiB physical), ~96-100 MiB
    # on v5e/v6e (128 MiB physical).
    vmem_cap = 64 * 1024 * 1024
    try:
        vmem_cap = int(getattr(pltpu.get_tpu_info(), "vmem_capacity_bytes", vmem_cap))
    except Exception:
        pass
    vmem_limit = min((vmem_cap * 3) // 4, 100 * 1024 * 1024)

    imgs_per_blk = _pick_images_per_block(B, S_pad, C_in_p, C_mid_p, C_out_p,
                                          vmem_limit)
    num_blocks = B // imgs_per_blk
    lanes_blk = imgs_per_blk * S_pad

    # Fold images onto the lane axis: (B, C, H, W) -> (C_in_p, B * S_pad).
    x_flat = x_nchw.reshape(B, C_in, S)
    x_flat = jnp.pad(x_flat, ((0, 0), (0, C_in_p - C_in), (0, S_pad - S)))
    x_flat = jnp.transpose(x_flat, (1, 0, 2)).reshape(C_in_p, B * S_pad)

    masks_one = _border_masks(H, W, S_pad)                  # (4, S_pad)
    masks = jnp.tile(masks_one, (1, imgs_per_blk)).reshape(4, 1, lanes_blk)

    kernel = _make_kernel(W, C_mid_p, C_out_p)

    flops = 2 * 9 * (C_mid * C_in + C_out * C_mid) * S * B
    bytes_accessed = int(x_flat.size * 4 + C_out_p * B * S_pad * 4
                         + (w1_stk.size + w2_stk.size) * 2
                         + masks.size * 4 + (b1_col.size + b2_col.size) * 4)

    out_flat = pl.pallas_call(
        kernel,
        out_shape=jax.ShapeDtypeStruct((C_out_p, B * S_pad), x_nchw.dtype),
        grid=(num_blocks,),
        in_specs=[
            pl.BlockSpec((C_in_p, lanes_blk), lambda i: (0, i)),        # x lane block
            pl.BlockSpec((4, 1, lanes_blk), lambda i: (0, 0, 0)),       # border masks
            pl.BlockSpec((3 * C_mid_p, 3 * C_in_p), lambda i: (0, 0)),  # W1 (bf16, BN-folded)
            pl.BlockSpec((C_mid_p, 1), lambda i: (0, 0)),               # b1 (BN-folded)
            pl.BlockSpec((3 * C_out_p, 3 * C_mid_p), lambda i: (0, 0)),  # W2 (bf16, BN-folded)
            pl.BlockSpec((C_out_p, 1), lambda i: (0, 0)),               # b2 (BN-folded)
        ],
        out_specs=pl.BlockSpec((C_out_p, lanes_blk), lambda i: (0, i)),
        scratch_shapes=[pltpu.VMEM((C_mid_p, lanes_blk), jnp.float32)],  # y1 staging
        compiler_params=pltpu.CompilerParams(
            dimension_semantics=("parallel",),
            vmem_limit_bytes=vmem_limit,
        ),
        cost_estimate=pl.CostEstimate(flops=int(flops), transcendentals=0,
                                      bytes_accessed=bytes_accessed),
    )(x_flat, masks, w1_stk, b1_col, w2_stk, b2_col)

    # Back to NCHW, dropping channel / lane padding.
    out = out_flat.reshape(C_out_p, B, S_pad)[:C_out, :, :S]
    return jnp.transpose(out, (1, 0, 2)).reshape(B, C_out, H, W)


def _reference(x, params, eps=1e-5):
    """Pure-JAX f32 reference (eval-mode BN) for verification."""
    def conv_bn_relu(inp, w, b, gamma, beta, mean, var):
        y = jax.lax.conv_general_dilated(
            inp, w, window_strides=(1, 1), padding="SAME",
            dimension_numbers=("NCHW", "OIHW", "NCHW"))
        y = y + b[None, :, None, None]
        scale = (gamma / jnp.sqrt(var + eps))[None, :, None, None]
        y = (y - mean[None, :, None, None]) * scale + beta[None, :, None, None]
        return jnp.maximum(y, 0.0)

    y = conv_bn_relu(x, params["w1"], params["b1"], params["gamma1"],
                     params["beta1"], params["mean1"], params["var1"])
    y = conv_bn_relu(y, params["w2"], params["b2"], params["gamma2"],
                     params["beta2"], params["mean2"], params["var2"])
    return y


if __name__ == "__main__":
    # Small shapes consistent with the module: DoubleConv(4, 16), 16x16 images.
    B, C_in, C_out, H, W = 2, 4, 16, 16, 16

    key = jax.random.PRNGKey(0)
    ks = jax.random.split(key, 13)

    params = {
        # Conv2d(C_in, C_out, 3, padding=1) + BatchNorm2d(C_out)
        "w1": 0.1 * jax.random.normal(ks[0], (C_out, C_in, 3, 3), jnp.float32),
        "b1": 0.1 * jax.random.normal(ks[1], (C_out,), jnp.float32),
        "gamma1": 1.0 + 0.1 * jax.random.normal(ks[2], (C_out,), jnp.float32),
        "beta1": 0.1 * jax.random.normal(ks[3], (C_out,), jnp.float32),
        "mean1": 0.05 * jax.random.normal(ks[4], (C_out,), jnp.float32),
        "var1": jnp.abs(1.0 + 0.1 * jax.random.normal(ks[5], (C_out,), jnp.float32)),
        # Conv2d(C_out, C_out, 3, padding=1) + BatchNorm2d(C_out)
        "w2": 0.1 * jax.random.normal(ks[6], (C_out, C_out, 3, 3), jnp.float32),
        "b2": 0.1 * jax.random.normal(ks[7], (C_out,), jnp.float32),
        "gamma2": 1.0 + 0.1 * jax.random.normal(ks[8], (C_out,), jnp.float32),
        "beta2": 0.1 * jax.random.normal(ks[9], (C_out,), jnp.float32),
        "mean2": 0.05 * jax.random.normal(ks[10], (C_out,), jnp.float32),
        "var2": jnp.abs(1.0 + 0.1 * jax.random.normal(ks[11], (C_out,), jnp.float32)),
    }

    x = jax.random.normal(ks[12], (B, C_in, H, W), jnp.float32)

    out = jax.jit(double_conv)(x, params)
    out = jax.block_until_ready(out)

    ref = _reference(x, params)
    assert out.shape == (B, C_out, H, W)
    # bf16 MXU operands -> looser tolerance than a pure-f32 kernel would need.
    assert jnp.allclose(out, ref, atol=5e-2, rtol=5e-2), "mismatch vs reference"

    print("KERNEL_OK")
</pallas_src>

<mosaic_0001>
module attributes {stable_mosaic.version = 11 : i64} {
  func.func @kernel(%arg0: i32, %arg1: memref<8x256xf32, #tpu.memory_space<vmem>>, %arg2: memref<4x1x256xf32, #tpu.memory_space<vmem>>, %arg3: memref<48x24xbf16, #tpu.memory_space<vmem>>, %arg4: memref<16x1xf32, #tpu.memory_space<vmem>>, %arg5: memref<48x48xbf16, #tpu.memory_space<vmem>>, %arg6: memref<16x1xf32, #tpu.memory_space<vmem>>, %arg7: memref<16x256xf32, #tpu.memory_space<vmem>>, %arg8: memref<16x256xf32, #tpu.memory_space<vmem>>) attributes {dimension_semantics = [#tpu.dimension_semantics<parallel>], iteration_bounds = array<i64: 2>, scalar_prefetch = 0 : i64, scratch_operands = 1 : i64, tpu.core_type = #tpu.core_type<tc>, window_params = [{transform_indices = @transform_0, window_bounds = array<i64: 8, 256>}, {pipeline_mode = #tpu.pipeline_mode<synchronous>, transform_indices = @transform_1, window_bounds = array<i64: 4, 1, 256>}, {pipeline_mode = #tpu.pipeline_mode<synchronous>, transform_indices = @transform_2, window_bounds = array<i64: 48, 24>}, {pipeline_mode = #tpu.pipeline_mode<synchronous>, transform_indices = @transform_3, window_bounds = array<i64: 16, 1>}, {pipeline_mode = #tpu.pipeline_mode<synchronous>, transform_indices = @transform_4, window_bounds = array<i64: 48, 48>}, {pipeline_mode = #tpu.pipeline_mode<synchronous>, transform_indices = @transform_5, window_bounds = array<i64: 16, 1>}, {transform_indices = @transform_6, window_bounds = array<i64: 16, 256>}]} {
    %c0 = arith.constant 0 : index
    %c0_0 = arith.constant 0 : index
    %c0_1 = arith.constant 0 : index
    %0 = vector.load %arg2[%c0, %c0_0, %c0_1] : memref<4x1x256xf32, #tpu.memory_space<vmem>>, vector<1x1x256xf32>
    %1 = vector.shape_cast %0 : vector<1x1x256xf32> to vector<1x256xf32>
    %c1 = arith.constant 1 : index
    %c0_2 = arith.constant 0 : index
    %c0_3 = arith.constant 0 : index
    %2 = vector.load %arg2[%c1, %c0_2, %c0_3] : memref<4x1x256xf32, #tpu.memory_space<vmem>>, vector<1x1x256xf32>
    %3 = vector.shape_cast %2 : vector<1x1x256xf32> to vector<1x256xf32>
    %c2 = arith.constant 2 : index
    %c0_4 = arith.constant 0 : index
    %c0_5 = arith.constant 0 : index
    %4 = vector.load %arg2[%c2, %c0_4, %c0_5] : memref<4x1x256xf32, #tpu.memory_space<vmem>>, vector<1x1x256xf32>
    %5 = vector.shape_cast %4 : vector<1x1x256xf32> to vector<1x256xf32>
    %c3 = arith.constant 3 : index
    %c0_6 = arith.constant 0 : index
    %c0_7 = arith.constant 0 : index
    %6 = vector.load %arg2[%c3, %c0_6, %c0_7] : memref<4x1x256xf32, #tpu.memory_space<vmem>>, vector<1x1x256xf32>
    %7 = vector.shape_cast %6 : vector<1x1x256xf32> to vector<1x256xf32>
    %c0_8 = arith.constant 0 : index
    %c0_9 = arith.constant 0 : index
    %8 = vector.load %arg1[%c0_8, %c0_9] : memref<8x256xf32, #tpu.memory_space<vmem>>, vector<8x256xf32>
    %c16_i32 = arith.constant 16 : i32
    %9 = tpu.dynamic_rotate %8 by %c16_i32 dim 1 : vector<8x256xf32>, i32 -> vector<8x256xf32>
    %10 = vector.broadcast %1 : vector<1x256xf32> to vector<8x256xf32>
    %11 = arith.mulf %9, %10 : vector<8x256xf32>
    %c240_i32 = arith.constant 240 : i32
    %12 = tpu.dynamic_rotate %8 by %c240_i32 dim 1 : vector<8x256xf32>, i32 -> vector<8x256xf32>
    %13 = vector.broadcast %3 : vector<1x256xf32> to vector<8x256xf32>
    %14 = arith.mulf %12, %13 : vector<8x256xf32>
    %15 = tpu.concatenate %11, %8, %14 in 0 : vector<8x256xf32>, vector<8x256xf32>, vector<8x256xf32> -> vector<24x256xf32>
    %16 = arith.truncf %15 : vector<24x256xf32> to vector<24x256xbf16>
    %c0_10 = arith.constant 0 : index
    %c0_11 = arith.constant 0 : index
    %17 = vector.load %arg3[%c0_10, %c0_11] : memref<48x24xbf16, #tpu.memory_space<vmem>>, vector<48x24xbf16>
    %cst = arith.constant dense<0.000000e+00> : vector<48x256xf32>
    %18 = tpu.matmul %17, %16, %cst {dimension_numbers = #tpu.dot_dimension_numbers<[1], [0], [0], [1], [0, 0, 1, 1], [], []>} : vector<48x24xbf16>, vector<24x256xbf16>, vector<48x256xf32> -> vector<48x256xf32>
    %19 = vector.extract_strided_slice %18 {offsets = [0, 0], sizes = [16, 256], strides = [1, 1]} : vector<48x256xf32> to vector<16x256xf32>
    %20 = vector.extract_strided_slice %18 {offsets = [16, 0], sizes = [16, 256], strides = [1, 1]} : vector<48x256xf32> to vector<16x256xf32>
    %21 = vector.extract_strided_slice %18 {offsets = [32, 0], sizes = [16, 256], strides = [1, 1]} : vector<48x256xf32> to vector<16x256xf32>
    %c1_i32 = arith.constant 1 : i32
    %22 = tpu.dynamic_rotate %19 by %c1_i32 dim 1 : vector<16x256xf32>, i32 -> vector<16x256xf32>
    %23 = vector.broadcast %5 : vector<1x256xf32> to vector<16x256xf32>
    %24 = arith.mulf %22, %23 : vector<16x256xf32>
    %25 = arith.addf %20, %24 : vector<16x256xf32>
    %c255_i32 = arith.constant 255 : i32
    %26 = tpu.dynamic_rotate %21 by %c255_i32 dim 1 : vector<16x256xf32>, i32 -> vector<16x256xf32>
    %27 = vector.broadcast %7 : vector<1x256xf32> to vector<16x256xf32>
    %28 = arith.mulf %26, %27 : vector<16x256xf32>
    %29 = arith.addf %25, %28 : vector<16x256xf32>
    %c0_12 = arith.constant 0 : index
    %c0_13 = arith.constant 0 : index
    %30 = vector.load %arg4[%c0_12, %c0_13] : memref<16x1xf32, #tpu.memory_space<vmem>>, vector<16x1xf32>
    %31 = vector.broadcast %30 : vector<16x1xf32> to vector<16x256xf32>
    %32 = arith.addf %29, %31 : vector<16x256xf32>
    %cst_14 = arith.constant 0.000000e+00 : f32
    %33 = vector.broadcast %cst_14 : f32 to vector<16x256xf32>
    %34 = arith.maximumf %32, %33 : vector<16x256xf32>
    %c0_15 = arith.constant 0 : index
    %c0_16 = arith.constant 0 : index
    %35 = vector.load %arg8[%c0_15, %c0_16] : memref<16x256xf32, #tpu.memory_space<vmem>>, vector<16x256xf32>
    tpu.vector_store %arg8[%c0_15, %c0_16], %34 {strides = array<i32>} : memref<16x256xf32, #tpu.memory_space<vmem>>, vector<16x256xf32>,
    %c0_17 = arith.constant 0 : index
    %c0_18 = arith.constant 0 : index
    %36 = vector.load %arg8[%c0_17, %c0_18] : memref<16x256xf32, #tpu.memory_space<vmem>>, vector<16x256xf32>
    %c16_i32_19 = arith.constant 16 : i32
    %37 = tpu.dynamic_rotate %36 by %c16_i32_19 dim 1 : vector<16x256xf32>, i32 -> vector<16x256xf32>
    %38 = vector.broadcast %1 : vector<1x256xf32> to vector<16x256xf32>
    %39 = arith.mulf %37, %38 : vector<16x256xf32>
    %c240_i32_20 = arith.constant 240 : i32
    %40 = tpu.dynamic_rotate %36 by %c240_i32_20 dim 1 : vector<16x256xf32>, i32 -> vector<16x256xf32>
    %41 = vector.broadcast %3 : vector<1x256xf32> to vector<16x256xf32>
    %42 = arith.mulf %40, %41 : vector<16x256xf32>
    %43 = tpu.concatenate %39, %36, %42 in 0 : vector<16x256xf32>, vector<16x256xf32>, vector<16x256xf32> -> vector<48x256xf32>
    %44 = arith.truncf %43 : vector<48x256xf32> to vector<48x256xbf16>
    %c0_21 = arith.constant 0 : index
    %c0_22 = arith.constant 0 : index
    %45 = vector.load %arg5[%c0_21, %c0_22] : memref<48x48xbf16, #tpu.memory_space<vmem>>, vector<48x48xbf16>
    %cst_23 = arith.constant dense<0.000000e+00> : vector<48x256xf32>
    %46 = tpu.matmul %45, %44, %cst_23 {dimension_numbers = #tpu.dot_dimension_numbers<[1], [0], [0], [1], [0, 0, 1, 1], [], []>} : vector<48x48xbf16>, vector<48x256xbf16>, vector<48x256xf32> -> vector<48x256xf32>
    %47 = vector.extract_strided_slice %46 {offsets = [0, 0], sizes = [16, 256], strides = [1, 1]} : vector<48x256xf32> to vector<16x256xf32>
    %48 = vector.extract_strided_slice %46 {offsets = [16, 0], sizes = [16, 256], strides = [1, 1]} : vector<48x256xf32> to vector<16x256xf32>
    %49 = vector.extract_strided_slice %46 {offsets = [32, 0], sizes = [16, 256], strides = [1, 1]} : vector<48x256xf32> to vector<16x256xf32>
    %c1_i32_24 = arith.constant 1 : i32
    %50 = tpu.dynamic_rotate %47 by %c1_i32_24 dim 1 : vector<16x256xf32>, i32 -> vector<16x256xf32>
    %51 = vector.broadcast %5 : vector<1x256xf32> to vector<16x256xf32>
    %52 = arith.mulf %50, %51 : vector<16x256xf32>
    %53 = arith.addf %48, %52 : vector<16x256xf32>
    %c255_i32_25 = arith.constant 255 : i32
    %54 = tpu.dynamic_rotate %49 by %c255_i32_25 dim 1 : vector<16x256xf32>, i32 -> vector<16x256xf32>
    %55 = vector.broadcast %7 : vector<1x256xf32> to vector<16x256xf32>
    %56 = arith.mulf %54, %55 : vector<16x256xf32>
    %57 = arith.addf %53, %56 : vector<16x256xf32>
    %c0_26 = arith.constant 0 : index
    %c0_27 = arith.constant 0 : index
    %58 = vector.load %arg6[%c0_26, %c0_27] : memref<16x1xf32, #tpu.memory_space<vmem>>, vector<16x1xf32>
    %59 = vector.broadcast %58 : vector<16x1xf32> to vector<16x256xf32>
    %60 = arith.addf %57, %59 : vector<16x256xf32>
    %cst_28 = arith.constant 0.000000e+00 : f32
    %61 = vector.broadcast %cst_28 : f32 to vector<16x256xf32>
    %62 = arith.maximumf %60, %61 : vector<16x256xf32>
    %c0_29 = arith.constant 0 : index
    %c0_30 = arith.constant 0 : index
    %63 = vector.load %arg7[%c0_29, %c0_30] : memref<16x256xf32, #tpu.memory_space<vmem>>, vector<16x256xf32>
    tpu.vector_store %arg7[%c0_29, %c0_30], %62 {strides = array<i32>} : memref<16x256xf32, #tpu.memory_space<vmem>>, vector<16x256xf32>,
    return
  }
  func.func @transform_0(%arg0: i32) -> (i32, i32) {
    %c0_i32 = arith.constant 0 : i32
    %c0_i32_0 = arith.constant 0 : i32
    return %c0_i32, %arg0 : i32, i32
  }
  func.func @transform_1(%arg0: i32) -> (i32, i32, i32) {
    %c0_i32 = arith.constant 0 : i32
    %c0_i32_0 = arith.constant 0 : i32
    %c0_i32_1 = arith.constant 0 : i32
    %c0_i32_2 = arith.constant 0 : i32
    return %c0_i32, %c0_i32_0, %c0_i32_1 : i32, i32, i32
  }
  func.func @transform_2(%arg0: i32) -> (i32, i32) {
    %c0_i32 = arith.constant 0 : i32
    %c0_i32_0 = arith.constant 0 : i32
    %c0_i32_1 = arith.constant 0 : i32
    return %c0_i32, %c0_i32_0 : i32, i32
  }
  func.func @transform_3(%arg0: i32) -> (i32, i32) {
    %c0_i32 = arith.constant 0 : i32
    %c0_i32_0 = arith.constant 0 : i32
    %c0_i32_1 = arith.constant 0 : i32
    return %c0_i32, %c0_i32_0 : i32, i32
  }
  func.func @transform_4(%arg0: i32) -> (i32, i32) {
    %c0_i32 = arith.constant 0 : i32
    %c0_i32_0 = arith.constant 0 : i32
    %c0_i32_1 = arith.constant 0 : i32
    return %c0_i32, %c0_i32_0 : i32, i32
  }
  func.func @transform_5(%arg0: i32) -> (i32, i32) {
    %c0_i32 = arith.constant 0 : i32
    %c0_i32_0 = arith.constant 0 : i32
    %c0_i32_1 = arith.constant 0 : i32
    return %c0_i32, %c0_i32_0 : i32, i32
  }
  func.func @transform_6(%arg0: i32) -> (i32, i32) {
    %c0_i32 = arith.constant 0 : i32
    %c0_i32_0 = arith.constant 0 : i32
    return %c0_i32, %arg0 : i32, i32
  }
}

</mosaic_0001>

<llo_original>
// kernel: double_conv.1
$region0: #{double_conv.1}
  #allocation0 [shape = 'u32[]', space=smem, size = 0x4, offset = 0x4, fixed_abs, tag = 'smem constant byte address 0x4 - core index']
  #allocation1 [shape = 'u32[144,128]{1,0:T(1,128)}', space=vmem, size = 0x12000, scoped, tag = 'internal scratch']
  #allocation2 [shape = 'f32[16,256]{1,0:T(8,128)}', space=vmem, size = 0x4000, scoped, tag = 'scratch operand']
  %s0 = inlined_call_operand.vmem [shape: f32[8,512], index: 0, kind: input, shape index: {}]
  %s1 = inlined_call_operand.vmem [shape: f32[4,1,256], index: 1, kind: input, shape index: {}]
  %s2 = inlined_call_operand.vmem [shape: bf16[48,24], index: 2, kind: input, shape index: {}]
  %s3 = inlined_call_operand.vmem [shape: f32[16,1], index: 3, kind: input, shape index: {}]
  %s4 = inlined_call_operand.vmem [shape: bf16[48,48], index: 4, kind: input, shape index: {}]
  %s5 = inlined_call_operand.vmem [shape: f32[16,1], index: 5, kind: input, shape index: {}]
  %s6 = inlined_call_operand.vmem [shape: f32[16,512], index: 6, kind: output, shape index: {}]
  %s7 = sld [smem:[#allocation0]]
  $region76: #{double_conv.1} parent=0
    _
  %s9 = ssub.s32 1, %s7
  %s10 = scalar_select 0, %s9, %s7
  $region1: #{double_conv.1} parent=0
    #allocation3 [shape = 'u8[32768]{0}', space=vmem, size = 0x8000, scoped, tag = 'output window, operand 0']
    loop: start=0, step=1, limit=4
    $region2: #{double_conv.1} parent=1 // loop_pre_header
      _
    $region3: #{double_conv.1} parent=1 // loop_header
      %s12 = sphi 0, %s16
      %p13 = scmp.ge.s32.totalorder %s12, 4
      %s22 = sphi 0, %s24
      %s25 = sphi 0, %s22
      %s26 = sphi 0, %s25
      %s42 = sphi 0, %s26
      %s46 = sphi 0, %s46
      %s48 = sphi 0, %s46
      %s49 = sphi 0, %s48
      %s63 = sphi 0, %s49
      %s67 = sphi 0, %s67
      %s69 = sphi 0, %s67
      %s70 = sphi 0, %s69
      %s84 = sphi 0, %s70
      %s88 = sphi 0, %s88
      %s90 = sphi 0, %s88
      %s91 = sphi 0, %s90
      %s105 = sphi 0, %s91
      %s109 = sphi 0, %s109
      %s111 = sphi 0, %s109
      %s112 = sphi 0, %s111
      %s126 = sphi 0, %s112
      %s130 = sphi 0, %s130
      %s132 = sphi 0, %s130
      %s133 = sphi 0, %s132
      %s147 = sphi 0, %s133
      %s153 = sphi 0, %s155
      %s156 = sphi 0, %s153
      %s157 = sphi 0, %s156
      %s173 = sphi 0, %s157
    $region4: #{double_conv.1} parent=1 // loop_header_branch
      %15 = sbr.rel (%p13) target = $region8
    $region5: #{double_conv.1} parent=1 // loop_body
      %s17 = ssub.s32 %s12, 1
      %s18 = ssub.s32 %s12, 2
      %s19 = sadd.s32 %s12, 1
      %s20 = ssub.s32 %s12, %s19
      %p21 = scmp.eq.s32.totalorder %s20, 0
      %s23 = sadd.s32 %s22, 1
      %s24 = scalar_select %p21, %s22, %s23
      %p27 = pneg %p21
      %p28 = scmp.eq.s32.totalorder %s12, 1
      %p29 = por %p27, %p28
      %p30 = scmp.ne.s32.totalorder %s22, %s25
      %p31 = scmp.eq.s32.totalorder %s12, 0
      %p32 = por %p30, %p31
      %p33 = scmp.ne.s32.totalorder %s22, %s25
      %p34 = scmp.eq.s32.totalorder %s17, 1
      %p35 = por %p33, %p34
      %p36 = scmp.ne.s32.totalorder %s25, %s26
      %p37 = scmp.eq.s32.totalorder %s17, 0
      %p38 = por %p36, %p37
      %p39 = scmp.ne.s32.totalorder %s25, %s26
      %p40 = scmp.eq.s32.totalorder %s18, 1
      %p41 = por %p39, %p40
      %p43 = scmp.ne.s32.totalorder %s26, %s42
      %p44 = scmp.eq.s32.totalorder %s18, 0
      %p45 = por %p43, %p44
      %s47 = sadd.s32 %s46, 1
      %p50 = scmp.eq.s32.totalorder %s12, 1
      %p51 = scmp.ne.s32.totalorder %s46, %s48
      %p52 = scmp.eq.s32.totalorder %s12, 0
      %p53 = por %p51, %p52
      %p54 = scmp.ne.s32.totalorder %s46, %s48
      %p55 = scmp.eq.s32.totalorder %s17, 1
      %p56 = por %p54, %p55
      %p57 = scmp.ne.s32.totalorder %s48, %s49
      %p58 = scmp.eq.s32.totalorder %s17, 0
      %p59 = por %p57, %p58
      %p60 = scmp.ne.s32.totalorder %s48, %s49
      %p61 = scmp.eq.s32.totalorder %s18, 1
      %p62 = por %p60, %p61
      %p64 = scmp.ne.s32.totalorder %s49, %s63
      %p65 = scmp.eq.s32.totalorder %s18, 0
      %p66 = por %p64, %p65
      %s68 = sadd.s32 %s67, 1
      %p71 = scmp.eq.s32.totalorder %s12, 1
      %p72 = scmp.ne.s32.totalorder %s67, %s69
      %p73 = scmp.eq.s32.totalorder %s12, 0
      %p74 = por %p72, %p73
      %p75 = scmp.ne.s32.totalorder %s67, %s69
      %p76 = scmp.eq.s32.totalorder %s17, 1
      %p77 = por %p75, %p76
      %p78 = scmp.ne.s32.totalorder %s69, %s70
      %p79 = scmp.eq.s32.totalorder %s17, 0
      %p80 = por %p78, %p79
      %p81 = scmp.ne.s32.totalorder %s69, %s70
      %p82 = scmp.eq.s32.totalorder %s18, 1
      %p83 = por %p81, %p82
      %p85 = scmp.ne.s32.totalorder %s70, %s84
      %p86 = scmp.eq.s32.totalorder %s18, 0
      %p87 = por %p85, %p86
      %s89 = sadd.s32 %s88, 1
      %p92 = scmp.eq.s32.totalorder %s12, 1
      %p93 = scmp.ne.s32.totalorder %s88, %s90
      %p94 = scmp.eq.s32.totalorder %s12, 0
      %p95 = por %p93, %p94
      %p96 = scmp.ne.s32.totalorder %s88, %s90
      %p97 = scmp.eq.s32.totalorder %s17, 1
      %p98 = por %p96, %p97
      %p99 = scmp.ne.s32.totalorder %s90, %s91
      %p100 = scmp.eq.s32.totalorder %s17, 0
      %p101 = por %p99, %p100
      %p102 = scmp.ne.s32.totalorder %s90, %s91
      %p103 = scmp.eq.s32.totalorder %s18, 1
      %p104 = por %p102, %p103
      %p106 = scmp.ne.s32.totalorder %s91, %s105
      %p107 = scmp.eq.s32.totalorder %s18, 0
      %p108 = por %p106, %p107
      %s110 = sadd.s32 %s109, 1
      %p113 = scmp.eq.s32.totalorder %s12, 1
      %p114 = scmp.ne.s32.totalorder %s109, %s111
      %p115 = scmp.eq.s32.totalorder %s12, 0
      %p116 = por %p114, %p115
      %p117 = scmp.ne.s32.totalorder %s109, %s111
      %p118 = scmp.eq.s32.totalorder %s17, 1
      %p119 = por %p117, %p118
      %p120 = scmp.ne.s32.totalorder %s111, %s112
      %p121 = scmp.eq.s32.totalorder %s17, 0
      %p122 = por %p120, %p121
      %p123 = scmp.ne.s32.totalorder %s111, %s112
      %p124 = scmp.eq.s32.totalorder %s18, 1
      %p125 = por %p123, %p124
      %p127 = scmp.ne.s32.totalorder %s112, %s126
      %p128 = scmp.eq.s32.totalorder %s18, 0
      %p129 = por %p127, %p128
      %s131 = sadd.s32 %s130, 1
      %p134 = scmp.eq.s32.totalorder %s12, 1
      %p135 = scmp.ne.s32.totalorder %s130, %s132
      %p136 = scmp.eq.s32.totalorder %s12, 0
      %p137 = por %p135, %p136
      %p138 = scmp.ne.s32.totalorder %s130, %s132
      %p139 = scmp.eq.s32.totalorder %s17, 1
      %p140 = por %p138, %p139
      %p141 = scmp.ne.s32.totalorder %s132, %s133
      %p142 = scmp.eq.s32.totalorder %s17, 0
      %p143 = por %p141, %p142
      %p144 = scmp.ne.s32.totalorder %s132, %s133
      %p145 = scmp.eq.s32.totalorder %s18, 1
      %p146 = por %p144, %p145
      %p148 = scmp.ne.s32.totalorder %s133, %s147
      %p149 = scmp.eq.s32.totalorder %s18, 0
      %p150 = por %p148, %p149
      %s151 = ssub.s32 %s12, %s19
      %p152 = scmp.eq.s32.totalorder %s151, 0
      %s154 = sadd.s32 %s153, 1
      %s155 = scalar_select %p152, %s153, %s154
      %p158 = pneg %p152
      %p159 = scmp.eq.s32.totalorder %s12, 1
      %p160 = por %p158, %p159
      %p161 = scmp.ne.s32.totalorder %s153, %s156
      %p162 = scmp.eq.s32.totalorder %s12, 0
      %p163 = por %p161, %p162
      %p164 = scmp.ne.s32.totalorder %s153, %s156
      %p165 = scmp.eq.s32.totalorder %s17, 1
      %p166 = por %p164, %p165
      %p167 = scmp.ne.s32.totalorder %s156, %s157
      %p168 = scmp.eq.s32.totalorder %s17, 0
      %p169 = por %p167, %p168
      %p170 = scmp.ne.s32.totalorder %s156, %s157
      %p171 = scmp.eq.s32.totalorder %s18, 1
      %p172 = por %p170, %p171
      %p174 = scmp.ne.s32.totalorder %s157, %s173
      %p175 = scmp.eq.s32.totalorder %s18, 0
      %p176 = por %p174, %p175
      %p177 = scmp.le.s32.totalorder 1, %s12
      %p178 = scmp.lt.s32.totalorder %s12, 3
      %p179 = pnand %p177, %p178
      %p180 = pneg %p179
      // Predicated region
      $region9: #{double_conv.1} parent=5 // pred_check
        _
      $region10: #{double_conv.1} parent=5 // pred_check_branch
        %182 = sbr.rel (%p179) target = $region12
      $region11: #{double_conv.1} parent=5 // pred_region
        %s183 = ssub.s32 %s12, 1
        // Predicated region
        $region13: #{double_conv.1} parent=11 // pred_check
          %p184 = pneg %p59
        $region14: #{double_conv.1} parent=11 // pred_check_branch
          %186 = sbr.rel (%p184) target = $region16
        $region15: #{double_conv.1} parent=11 // pred_region
          _
        $region16: #{double_conv.1} parent=11 // pred_fallthru
          _
        // Predicated region
        $region17: #{double_conv.1} parent=11 // pred_check
          %p187 = pneg %p80
        $region18: #{double_conv.1} parent=11 // pred_check_branch
          %189 = sbr.rel (%p187) target = $region20
        $region19: #{double_conv.1} parent=11 // pred_region
          _
        $region20: #{double_conv.1} parent=11 // pred_fallthru
          _
        // Predicated region
        $region21: #{double_conv.1} parent=11 // pred_check
          %p190 = pneg %p101
        $region22: #{double_conv.1} parent=11 // pred_check_branch
          %192 = sbr.rel (%p190) target = $region24
        $region23: #{double_conv.1} parent=11 // pred_region
          _
        $region24: #{double_conv.1} parent=11 // pred_fallthru
          _
        // Predicated region
        $region25: #{double_conv.1} parent=11 // pred_check
          %p193 = pneg %p122
        $region26: #{double_conv.1} parent=11 // pred_check_branch
          %195 = sbr.rel (%p193) target = $region28
        $region27: #{double_conv.1} parent=11 // pred_region
          _
        $region28: #{double_conv.1} parent=11 // pred_fallthru
          _
        // Predicated region
        $region29: #{double_conv.1} parent=11 // pred_check
          %p196 = pneg %p143
        $region30: #{double_conv.1} parent=11 // pred_check_branch
          %198 = sbr.rel (%p196) target = $region32
        $region31: #{double_conv.1} parent=11 // pred_region
          _
        $region32: #{double_conv.1} parent=11 // pred_fallthru
          _
      $region12: #{double_conv.1} parent=5 // pred_fallthru
        _
      %p199 = scmp.lt.s32.totalorder %s12, 2
      // Predicated region
      $region33: #{double_conv.1} parent=5 // pred_check
        %p200 = pneg %p199
      $region34: #{double_conv.1} parent=5 // pred_check_branch
        %202 = sbr.rel (%p200) target = $region36
      $region35: #{double_conv.1} parent=5 // pred_region
        // Predicated region
        $region37: #{double_conv.1} parent=35 // pred_check
          %p203 = pneg %p32
        $region38: #{double_conv.1} parent=35 // pred_check_branch
          %205 = sbr.rel (%p203) target = $region40
        $region39: #{double_conv.1} parent=35 // pred_region
          %s206 = smul.u32 2, %s12
          %p207 = scmp.lt.s32.totalorder %s206, 3
          %s208 = scalar_select %p207, %s206, 3
          %s209 = smul.addr %s208, 8
          %s210 = scalar_lea.vmem %s0, %s209
          %s211 = smul.u32 2, %s12
        $region40: #{double_conv.1} parent=35 // pred_fallthru
          _
      $region36: #{double_conv.1} parent=5 // pred_fallthru
        _
      %p212 = scmp.le.s32.totalorder 1, %s12
      %p213 = scmp.lt.s32.totalorder %s12, 3
      %p214 = pnand %p212, %p213
      %p215 = pneg %p214
      // Predicated region
      $region41: #{double_conv.1} parent=5 // pred_check
        _
      $region42: #{double_conv.1} parent=5 // pred_check_branch
        %217 = sbr.rel (%p214) target = $region44
      $region43: #{double_conv.1} parent=5 // pred_region
        %s218 = ssub.s32 %s12, 1
        %s219 = smul.u32 2, %s17
        %p220 = scmp.lt.s32.totalorder %s219, 3
        %s221 = scalar_select %p220, %s219, 3
        %s222 = smul.addr %s221, 8
        %s223 = scalar_lea.vmem %s0, %s222
        %p224 = pneg %p38
        %p225 = pneg %p35
        %p226 = pneg %p59
        %p227 = pneg %p56
        %p228 = pneg %p80
        %p229 = pneg %p77
        %p230 = pneg %p101
        %p231 = pneg %p98
        %p232 = pneg %p122
        %p233 = pneg %p119
        %p234 = pneg %p143
        %p235 = pneg %p140
        %p236 = pneg %p169
        %p237 = pneg %p166
        %s238 = sand.u32 %s156, 1
        %s239 = sand.u32 %s156, 1
        %s240 = smul.addr %s239, 32
        %s241 = scalar_lea.vmem [#allocation3], %s240
        %s242 = smul.u32 2, %s17
        %p243 = scmp.lt.s32.totalorder %s242, 3
        %s244 = scalar_select %p243, %s242, 3
        %s245 = smul.addr %s244, 8
        %s246 = scalar_lea.vmem %s0, %s245
        %s247 = smul.u32 2, %s17
        %s248 = smul.u32 2, %s17
        %v250 = vld [vmem:[%s1] sm:$0x3]
        %s251 = scalar_lea.vmem %s1, 2
        %v252 = vld [vmem:[%s251] sm:$0x3]
        %s253 = scalar_lea.vmem %s1, 4
        %v254 = vld [vmem:[%s253] sm:$0x3]
        %s255 = scalar_lea.vmem %s1, 6
        %v256 = vld [vmem:[%s255] sm:$0x3]
        %v257 = vld [vmem:[%s246] sm:$0xff]
        %v258 = vld [vmem:[%s246 + $0x8] sm:$0xff]
        %259 = vrot.lane.b32.xlu0 %v257, 16
        %v260 = vpop.permute.xlu0 %259
        %261 = vrot.lane.b32.xlu0 %v258, 16
        %v262 = vpop.permute.xlu0 %261
        %v263 = vlaneseq
        %v264 = vand.u32 %v263, 127
        %vm265 = vcmp.lt.s32.totalorder %v264, 16
        %v266 = vsel %vm265, %v260, %v262
        %v267 = vsel %vm265, %v262, %v260
        %v269 = vlaneseq
        %v270 = vshrl.u32 %v269, 7
        %v271 = vsub.s32 0, %v270
        %v272 = vrot.slane %v250, %v271
        %v273 = vlaneseq
        %v274 = vshrl.u32 %v273, 7
        %v275 = vsub.s32 1, %v274
        %v276 = vrot.slane %v250, %v275
        %v279 = vmul.f32 %v267, %v272
        %v280 = vmul.f32 %v266, %v276
        %281 = vrot.lane.b32.xlu0 %v257, 112
        %v282 = vpop.permute.xlu0 %281
        %283 = vrot.lane.b32.xlu0 %v258, 112
        %v284 = vpop.permute.xlu0 %283
        %vm285 = vcmp.lt.s32.totalorder %v264, 112
        %v286 = vsel %vm285, %v282, %v284
        %v287 = vsel %vm285, %v284, %v282
        %v289 = vlaneseq
        %v290 = vshrl.u32 %v289, 7
        %v291 = vsub.s32 0, %v290
        %v292 = vrot.slane %v252, %v291
        %v293 = vlaneseq
        %v294 = vshrl.u32 %v293, 7
        %v295 = vsub.s32 1, %v294
        %v296 = vrot.slane %v252, %v295
        %v299 = vmul.f32 %v286, %v292
        %v300 = vmul.f32 %v287, %v296
        %v301 = vpack.c.bf16 %v257, %v279
        %v302 = vpack.c.bf16 %v258, %v280
        %v303 = vpack.c.bf16 %v299, %v299
        %v304 = vpack.c.bf16 %v300, %v300
        %v305 = vld [vmem:[%s2] sm:$0xf]
        %v306 = vld [vmem:[%s2 + $0x4] sm:$0xf]
        %v307 = vld [vmem:[%s2 + $0x8] sm:$0xf]
        %v308 = vld [vmem:[%s2 + $0xc] sm:$0xf]
        %v309 = vld [vmem:[%s2 + $0x10] sm:$0xf]
        %v310 = vld [vmem:[%s2 + $0x14] sm:$0xf]
        %v317 = vunpack.c.l.b16 %v305
        %v318 = vunpack.c.l.b16 %v306
        %v319 = vunpack.c.l.b16 %v307
        %v320 = vunpack.c.l.b16 %v308
        %v321 = vunpack.c.l.b16 %v309
        %v322 = vunpack.c.l.b16 %v310
        %v323 = vpack.c.b16 %v318, %v317
        %v324 = vpack.c.b16 %v320, %v319
        %v325 = vpack.c.b16 %v322, %v321
        %vm326 = vcmask 195584
        %v328 = vsel %vm326, %v323, 0
        %v331 = vsel %vm326, %v324, 0
        %v334 = vsel %vm326, %v325, 0
        %vm336 = vcmask 1043456
        %v338 = vsel %vm336, %v303, 0
        %v341 = vsel %vm336, %v304, 0
        %343 = vmatprep.subr.bf16.mxu0 %v302
        %344 = vmatpush1.bf16.msra.mxu0 %v301
        %345 = vmatprep.subr.bf16.mxu0 %v341
        %346 = vmatpush1.bf16.msra.mxu0 %v338
        %347 = vmatprep.subr.bf16.mxu0 0
        %348 = vmatpush1.bf16.msra.mxu0 0
        %349 = vmatprep.subr.bf16.mxu0 0
        %350 = vmatpush1.bf16.msra.mxu0 0
        %351 = vmatprep.subr.bf16.mxu0 0
        %352 = vmatpush1.bf16.msra.mxu0 0
        %353 = vmatprep.subr.bf16.mxu0 0
        %354 = vmatpush1.bf16.msra.mxu0 0
        %355 = vmatprep.subr.bf16.mxu0 0
        %356 = vmatpush1.bf16.msra.mxu0 0
        %357 = vmatprep.subr.bf16.mxu0 0
        %358 = vmatpush1.bf16.msra.mxu0 0
        %359 = vmatprep.subr.bf16.mxu0 0
        %360 = vmatpush1.bf16.msra.mxu0 0
        %361 = vmatprep.subr.bf16.mxu0 0
        %362 = vmatpush1.bf16.msra.mxu0 0
        %363 = vmatprep.subr.bf16.mxu0 0
        %364 = vmatpush1.bf16.msra.mxu0 0
        %365 = vmatprep.subr.bf16.mxu0 0
        %366 = vmatpush1.bf16.msra.mxu0 0
        %367 = vmatprep.subr.bf16.mxu0 0
        %368 = vmatpush1.bf16.msra.mxu0 0
        %369 = vmatprep.subr.bf16.mxu0 0
        %370 = vmatpush1.bf16.msra.mxu0 0
        %371 = vmatprep.subr.bf16.mxu0 0
        %372 = vmatpush1.bf16.msra.mxu0 0
        %373 = vmatprep.subr.bf16.mxu0 0
        %374 = vmatpush1.bf16.msra.mxu0 0
        %375 = vmatprep.mubr.bf16.mxu0 0
        %376 = vmatmul.mubr.bf16.gmra.mrb[0].mxu0 %v328
        %v377 = vpop.f32.mrb[0].mxu0
        %v378 = vadd.f32 0.0, %v377
        %v379 = vpop.f32.mrb[0].mxu0
        %v380 = vadd.f32 0.0, %v379
        %v381 = vpop.f32.mrb[0].mxu0
        %v382 = vadd.f32 0.0, %v381
        %v383 = vpop.f32.mrb[0].mxu0
        %v384 = vadd.f32 0.0, %v383
        %385 = vmatprep.mubr.bf16.mxu0 0
        %386 = vmatmul.mubr.bf16.gmra.mrb[0].mxu0 %v331
        %v387 = vpop.f32.mrb[0].mxu0
        %v388 = vadd.f32 0.0, %v387
        %v389 = vpop.f32.mrb[0].mxu0
        %v390 = vadd.f32 0.0, %v389
        %v391 = vpop.f32.mrb[0].mxu0
        %v392 = vadd.f32 0.0, %v391
        %v393 = vpop.f32.mrb[0].mxu0
        %v394 = vadd.f32 0.0, %v393
        %395 = vmatprep.mubr.bf16.mxu0 0
        %396 = vmatmul.mubr.bf16.gmra.mrb[0].mxu0 %v334
        %v397 = vpop.f32.mrb[0].mxu0
        %v398 = vadd.f32 0.0, %v397
        %v399 = vpop.f32.mrb[0].mxu0
        %v400 = vadd.f32 0.0, %v399
        %v401 = vpop.f32.mrb[0].mxu0
        %v402 = vadd.f32 0.0, %v401
        %v403 = vpop.f32.mrb[0].mxu0
        %v404 = vadd.f32 0.0, %v403
        %405 = vdwg.mxu0
        %406 = vrot.lane.b32.xlu0 %v378, 1
        %v407 = vpop.permute.xlu0 %406
        %408 = vrot.lane.b32.xlu0 %v382, 1
        %v409 = vpop.permute.xlu0 %408
        %410 = vrot.lane.b32.xlu0 %v380, 1
        %v411 = vpop.permute.xlu0 %410
        %412 = vrot.lane.b32.xlu0 %v384, 1
        %v413 = vpop.permute.xlu0 %412
        %vm414 = vcmp.lt.s32.totalorder %v264, 1
        %v415 = vsel %vm414, %v407, %v411
        %v416 = vsel %vm414, %v409, %v413
        %v417 = vsel %vm414, %v411, %v407
        %v418 = vsel %vm414, %v413, %v409
        %v420 = vlaneseq
        %v421 = vshrl.u32 %v420, 7
        %v422 = vsub.s32 0, %v421
        %v423 = vrot.slane %v254, %v422
        %v424 = vlaneseq
        %v425 = vshrl.u32 %v424, 7
        %v426 = vsub.s32 1, %v425
        %v427 = vrot.slane %v254, %v426
        %v430 = vmul.f32 %v417, %v423
        %v431 = vmul.f32 %v415, %v427
        %v432 = vmul.f32 %v418, %v423
        %v433 = vmul.f32 %v416, %v427
        %v434 = vadd.f32 %v388, %v430
        %v435 = vadd.f32 %v390, %v431
        %v436 = vadd.f32 %v392, %v432
        %v437 = vadd.f32 %v394, %v433
        %438 = vrot.lane.b32.xlu0 %v398, 127
        %v439 = vpop.permute.xlu0 %438
        %440 = vrot.lane.b32.xlu0 %v402, 127
        %v441 = vpop.permute.xlu0 %440
        %442 = vrot.lane.b32.xlu0 %v400, 127
        %v443 = vpop.permute.xlu0 %442
        %444 = vrot.lane.b32.xlu0 %v404, 127
        %v445 = vpop.permute.xlu0 %444
        %vm446 = vcmp.lt.s32.totalorder %v264, 127
        %v447 = vsel %vm446, %v439, %v443
        %v448 = vsel %vm446, %v441, %v445
        %v449 = vsel %vm446, %v443, %v439
        %v450 = vsel %vm446, %v445, %v441
        %v452 = vlaneseq
        %v453 = vshrl.u32 %v452, 7
        %v454 = vsub.s32 0, %v453
        %v455 = vrot.slane %v256, %v454
        %v456 = vlaneseq
        %v457 = vshrl.u32 %v456, 7
        %v458 = vsub.s32 1, %v457
        %v459 = vrot.slane %v256, %v458
        %v462 = vmul.f32 %v447, %v455
        %v463 = vmul.f32 %v449, %v459
        %v464 = vmul.f32 %v448, %v455
        %v465 = vmul.f32 %v450, %v459
        %v466 = vadd.f32 %v434, %v462
        %v467 = vadd.f32 %v435, %v463
        %v468 = vadd.f32 %v436, %v464
        %v469 = vadd.f32 %v437, %v465
        %v470 = vld [vmem:[%s3] sm:$0xff]
        %v471 = vld [vmem:[%s3 + $0x8] sm:$0xff]
        %473 = vset.pattern.permute.xlu0 0
        %474 = vperm.xlu0 %473, %v470
        %v475 = vpop.permute.xlu0 %474
        %478 = vset.pattern.permute.xlu0 0
        %479 = vperm.xlu0 %478, %v471
        %v480 = vpop.permute.xlu0 %479
        %v482 = vadd.f32 %v466, %v475
        %v483 = vadd.f32 %v467, %v475
        %v484 = vadd.f32 %v468, %v480
        %v485 = vadd.f32 %v469, %v480
        %v486 = vmax.f32 %v482, 0.0
        %v487 = vmax.f32 %v483, 0.0
        %v488 = vmax.f32 %v484, 0.0
        %v489 = vmax.f32 %v485, 0.0
        %490 = vst [vmem:[#allocation2] sm:$0xff] %v486
        %491 = vst [vmem:[#allocation2 + $0x8] sm:$0xff] %v487
        %492 = vst [vmem:[#allocation2 + $0x10] sm:$0xff] %v488
        %493 = vst [vmem:[#allocation2 + $0x18] sm:$0xff] %v489
        %v494 = vld [vmem:[#allocation2] sm:$0xff]
        %v495 = vld [vmem:[#allocation2 + $0x8] sm:$0xff]
        %v496 = vld [vmem:[#allocation2 + $0x10] sm:$0xff]
        %v497 = vld [vmem:[#allocation2 + $0x18] sm:$0xff]
        %498 = vrot.lane.b32.xlu0 %v494, 16
        %v499 = vpop.permute.xlu0 %498
        %500 = vrot.lane.b32.xlu0 %v496, 16
        %v501 = vpop.permute.xlu0 %500
        %502 = vrot.lane.b32.xlu0 %v495, 16
        %v503 = vpop.permute.xlu0 %502
        %504 = vrot.lane.b32.xlu0 %v497, 16
        %v505 = vpop.permute.xlu0 %504
        %v506 = vsel %vm265, %v499, %v503
        %v507 = vsel %vm265, %v501, %v505
        %v508 = vsel %vm265, %v503, %v499
        %v509 = vsel %vm265, %v505, %v501
        %v510 = vmul.f32 %v508, %v272
        %v511 = vmul.f32 %v506, %v276
        %v512 = vmul.f32 %v509, %v272
        %v513 = vmul.f32 %v507, %v276
        %514 = vrot.lane.b32.xlu0 %v494, 112
        %v515 = vpop.permute.xlu0 %514
        %516 = vrot.lane.b32.xlu0 %v496, 112
        %v517 = vpop.permute.xlu0 %516
        %518 = vrot.lane.b32.xlu0 %v495, 112
        %v519 = vpop.permute.xlu0 %518
        %520 = vrot.lane.b32.xlu0 %v497, 112
        %v521 = vpop.permute.xlu0 %520
        %v522 = vsel %vm285, %v515, %v519
        %v523 = vsel %vm285, %v517, %v521
        %v524 = vsel %vm285, %v519, %v515
        %v525 = vsel %vm285, %v521, %v517
        %v526 = vmul.f32 %v522, %v292
        %v527 = vmul.f32 %v524, %v296
        %v528 = vmul.f32 %v523, %v292
        %v529 = vmul.f32 %v525, %v296
        %v530 = vpack.c.bf16 %v512, %v510
        %v531 = vpack.c.bf16 %v513, %v511
        %v532 = vpack.c.bf16 %v496, %v494
        %v533 = vpack.c.bf16 %v497, %v495
        %v534 = vpack.c.bf16 %v528, %v526
        %v535 = vpack.c.bf16 %v529, %v527
        %v536 = vld [vmem:[%s4] sm:$0xf]
        %v537 = vld [vmem:[%s4 + $0x4] sm:$0xf]
        %v538 = vld [vmem:[%s4 + $0x8] sm:$0xf]
        %v539 = vld [vmem:[%s4 + $0xc] sm:$0xf]
        %v540 = vld [vmem:[%s4 + $0x10] sm:$0xf]
        %v541 = vld [vmem:[%s4 + $0x14] sm:$0xf]
        %v548 = vunpack.c.l.b16 %v536
        %v549 = vunpack.c.l.b16 %v537
        %v550 = vunpack.c.l.b16 %v538
        %v551 = vunpack.c.l.b16 %v539
        %v552 = vunpack.c.l.b16 %v540
        %v553 = vunpack.c.l.b16 %v541
        %v554 = vpack.c.b16 %v549, %v548
        %v555 = vpack.c.b16 %v551, %v550
        %v556 = vpack.c.b16 %v553, %v552
        %vm557 = vcmask 392192
        %v559 = vsel %vm557, %v554, 0
        %v562 = vsel %vm557, %v555, 0
        %v565 = vsel %vm557, %v556, 0
        %567 = vmatprep.subr.bf16.mxu0 %v531
        %568 = vmatpush1.bf16.msra.mxu0 %v530
        %569 = vmatprep.subr.bf16.mxu0 %v533
        %570 = vmatpush1.bf16.msra.mxu0 %v532
        %571 = vmatprep.subr.bf16.mxu0 %v535
        %572 = vmatpush1.bf16.msra.mxu0 %v534
        %573 = vmatprep.subr.bf16.mxu0 0
        %574 = vmatpush1.bf16.msra.mxu0 0
        %575 = vmatprep.subr.bf16.mxu0 0
        %576 = vmatpush1.bf16.msra.mxu0 0
        %577 = vmatprep.subr.bf16.mxu0 0
        %578 = vmatpush1.bf16.msra.mxu0 0
        %579 = vmatprep.subr.bf16.mxu0 0
        %580 = vmatpush1.bf16.msra.mxu0 0
        %581 = vmatprep.subr.bf16.mxu0 0
        %582 = vmatpush1.bf16.msra.mxu0 0
        %583 = vmatprep.subr.bf16.mxu0 0
        %584 = vmatpush1.bf16.msra.mxu0 0
        %585 = vmatprep.subr.bf16.mxu0 0
        %586 = vmatpush1.bf16.msra.mxu0 0
        %587 = vmatprep.subr.bf16.mxu0 0
        %588 = vmatpush1.bf16.msra.mxu0 0
        %589 = vmatprep.subr.bf16.mxu0 0
        %590 = vmatpush1.bf16.msra.mxu0 0
        %591 = vmatprep.subr.bf16.mxu0 0
        %592 = vmatpush1.bf16.msra.mxu0 0
        %593 = vmatprep.subr.bf16.mxu0 0
        %594 = vmatpush1.bf16.msra.mxu0 0
        %595 = vmatprep.subr.bf16.mxu0 0
        %596 = vmatpush1.bf16.msra.mxu0 0
        %597 = vmatprep.subr.bf16.mxu0 0
        %598 = vmatpush1.bf16.msra.mxu0 0
        %599 = vmatprep.mubr.bf16.mxu0 0
        %600 = vmatmul.mubr.bf16.gmra.mrb[0].mxu0 %v559
        %v601 = vpop.f32.mrb[0].mxu0
        %v602 = vadd.f32 0.0, %v601
        %v603 = vpop.f32.mrb[0].mxu0
        %v604 = vadd.f32 0.0, %v603
        %v605 = vpop.f32.mrb[0].mxu0
        %v606 = vadd.f32 0.0, %v605
        %v607 = vpop.f32.mrb[0].mxu0
        %v608 = vadd.f32 0.0, %v607
        %609 = vmatprep.mubr.bf16.mxu0 0
        %610 = vmatmul.mubr.bf16.gmra.mrb[0].mxu0 %v562
        %v611 = vpop.f32.mrb[0].mxu0
        %v612 = vadd.f32 0.0, %v611
        %v613 = vpop.f32.mrb[0].mxu0
        %v614 = vadd.f32 0.0, %v613
        %v615 = vpop.f32.mrb[0].mxu0
        %v616 = vadd.f32 0.0, %v615
        %v617 = vpop.f32.mrb[0].mxu0
        %v618 = vadd.f32 0.0, %v617
        %619 = vmatprep.mubr.bf16.mxu0 0
        %620 = vmatmul.mubr.bf16.gmra.mrb[0].mxu0 %v565
        %v621 = vpop.f32.mrb[0].mxu0
        %v622 = vadd.f32 0.0, %v621
        %v623 = vpop.f32.mrb[0].mxu0
        %v624 = vadd.f32 0.0, %v623
        %v625 = vpop.f32.mrb[0].mxu0
        %v626 = vadd.f32 0.0, %v625
        %v627 = vpop.f32.mrb[0].mxu0
        %v628 = vadd.f32 0.0, %v627
        %629 = vdwg.mxu0
        %630 = vrot.lane.b32.xlu0 %v602, 1
        %v631 = vpop.permute.xlu0 %630
        %632 = vrot.lane.b32.xlu0 %v606, 1
        %v633 = vpop.permute.xlu0 %632
        %634 = vrot.lane.b32.xlu0 %v604, 1
        %v635 = vpop.permute.xlu0 %634
        %636 = vrot.lane.b32.xlu0 %v608, 1
        %v637 = vpop.permute.xlu0 %636
        %v638 = vsel %vm414, %v631, %v635
        %v639 = vsel %vm414, %v633, %v637
        %v640 = vsel %vm414, %v635, %v631
        %v641 = vsel %vm414, %v637, %v633
        %v642 = vmul.f32 %v640, %v423
        %v643 = vmul.f32 %v638, %v427
        %v644 = vmul.f32 %v641, %v423
        %v645 = vmul.f32 %v639, %v427
        %v646 = vadd.f32 %v612, %v642
        %v647 = vadd.f32 %v614, %v643
        %v648 = vadd.f32 %v616, %v644
        %v649 = vadd.f32 %v618, %v645
        %650 = vrot.lane.b32.xlu0 %v622, 127
        %v651 = vpop.permute.xlu0 %650
        %652 = vrot.lane.b32.xlu0 %v626, 127
        %v653 = vpop.permute.xlu0 %652
        %654 = vrot.lane.b32.xlu0 %v624, 127
        %v655 = vpop.permute.xlu0 %654
        %656 = vrot.lane.b32.xlu0 %v628, 127
        %v657 = vpop.permute.xlu0 %656
        %v658 = vsel %vm446, %v651, %v655
        %v659 = vsel %vm446, %v653, %v657
        %v660 = vsel %vm446, %v655, %v651
        %v661 = vsel %vm446, %v657, %v653
        %v662 = vmul.f32 %v658, %v455
        %v663 = vmul.f32 %v660, %v459
        %v664 = vmul.f32 %v659, %v455
        %v665 = vmul.f32 %v661, %v459
        %v666 = vadd.f32 %v646, %v662
        %v667 = vadd.f32 %v647, %v663
        %v668 = vadd.f32 %v648, %v664
        %v669 = vadd.f32 %v649, %v665
        %v670 = vld [vmem:[%s5] sm:$0xff]
        %v671 = vld [vmem:[%s5 + $0x8] sm:$0xff]
        %673 = vset.pattern.permute.xlu0 0
        %674 = vperm.xlu0 %673, %v670
        %v675 = vpop.permute.xlu0 %674
        %678 = vset.pattern.permute.xlu0 0
        %679 = vperm.xlu0 %678, %v671
        %v680 = vpop.permute.xlu0 %679
        %v682 = vadd.f32 %v666, %v675
        %v683 = vadd.f32 %v667, %v675
        %v684 = vadd.f32 %v668, %v680
        %v685 = vadd.f32 %v669, %v680
        %v686 = vmax.f32 %v682, 0.0
        %v687 = vmax.f32 %v683, 0.0
        %v688 = vmax.f32 %v684, 0.0
        %v689 = vmax.f32 %v685, 0.0
        %690 = vst [vmem:[%s241] sm:$0xff] %v686
        %691 = vst [vmem:[%s241 + $0x8] sm:$0xff] %v687
        %692 = vst [vmem:[%s241 + $0x10] sm:$0xff] %v688
        %693 = vst [vmem:[%s241 + $0x18] sm:$0xff] %v689
        %s694 = sand.u32 %s156, 1
        %s695 = sand.u32 %s156, 1
        %s696 = smul.addr %s695, 32
        %s697 = scalar_lea.vmem [#allocation3], %s696
        // Predicated region
        $region45: #{double_conv.1} parent=43 // pred_check
          %p698 = pneg %p166
        $region46: #{double_conv.1} parent=43 // pred_check_branch
          %700 = sbr.rel (%p698) target = $region48
        $region47: #{double_conv.1} parent=43 // pred_region
          %s701 = smul.u32 2, %s17
          %s702 = smul.addr %s701, 8
          %s703 = scalar_lea.vmem %s6, %s702
          // Predicated region
          $region49: #{double_conv.1} parent=47 // pred_check
            _
          $region50: #{double_conv.1} parent=47 // pred_check_branch
            %705 = sbr.rel (0) target = $region52
          $region51: #{double_conv.1} parent=47 // pred_region
            // Predicated region
            $region53: #{double_conv.1} parent=51 // pred_check
              _
            $region54: #{double_conv.1} parent=51 // pred_check_branch
              %707 = sbr.rel (0) target = $region56
            $region55: #{double_conv.1} parent=51 // pred_region
              loop: start=0, step=1, limit=1
              $region57: #{double_conv.1} parent=55 // loop_pre_header
                _
              $region58: #{double_conv.1} parent=55 // loop_header
                %s709 = sphi 0, %s713
                %p710 = scmp.ge.s32.totalorder %s709, 1
                %s714 = sphi %s697, %s697
                %s715 = sphi %s703, %s703
              $region59: #{double_conv.1} parent=55 // loop_header_branch
                %712 = sbr.rel (%p710) target = $region63
              $region60: #{double_conv.1} parent=55 // loop_body
                %v716 = vld [vmem:[%s714] sm:$0xff]
                %717 = vst [vmem:[%s715] sm:$0xff] %v716
                %v718 = vld [vmem:[%s714 + $0x8] sm:$0xff]
                %719 = vst [vmem:[%s715 + $0x8] sm:$0xff] %v718
                %v720 = vld [vmem:[%s714 + $0x10] sm:$0xff]
                %721 = vst [vmem:[%s715 + $0x20] sm:$0xff] %v720
                %v722 = vld [vmem:[%s714 + $0x18] sm:$0xff]
                %723 = vst [vmem:[%s715 + $0x28] sm:$0xff] %v722
              $region61: #{double_conv.1} parent=55 // loop_footer
                %s713 = sadd.s32 1, %s709
              $region62: #{double_conv.1} parent=55 // loop_footer_branch
                %708 = sbr.rel target = $region58
              $region63: #{double_conv.1} parent=55 // loop_exit
                _
            $region56: #{double_conv.1} parent=51 // pred_fallthru
              _
            // Predicated region
            $region64: #{double_conv.1} parent=51 // pred_check
              _
            $region65: #{double_conv.1} parent=51 // pred_check_branch
              %725 = sbr.rel target = $region67
            $region66: #{double_conv.1} parent=51 // pred_region
              _
            $region67: #{double_conv.1} parent=51 // pred_fallthru
              _
          $region52: #{double_conv.1} parent=47 // pred_fallthru
            _
          %726 = vnop
        $region48: #{double_conv.1} parent=43 // pred_fallthru
          _
      $region44: #{double_conv.1} parent=5 // pred_fallthru
        _
      %p727 = scmp.le.s32.totalorder 2, %s12
      // Predicated region
      $region68: #{double_conv.1} parent=5 // pred_check
        %p728 = pneg %p727
      $region69: #{double_conv.1} parent=5 // pred_check_branch
        %730 = sbr.rel (%p728) target = $region71
      $region70: #{double_conv.1} parent=5 // pred_region
        %s731 = ssub.s32 %s12, 2
        // Predicated region
        $region72: #{double_conv.1} parent=70 // pred_check
          %p732 = pneg %p172
        $region73: #{double_conv.1} parent=70 // pred_check_branch
          %734 = sbr.rel (%p732) target = $region75
        $region74: #{double_conv.1} parent=70 // pred_region
          %s735 = sand.u32 %s157, 1
          %s736 = sand.u32 %s157, 1
          %s737 = smul.addr %s736, 32
          %s738 = scalar_lea.vmem [#allocation3], %s737
        $region75: #{double_conv.1} parent=70 // pred_fallthru
          _
      $region71: #{double_conv.1} parent=5 // pred_fallthru
        _
    $region6: #{double_conv.1} parent=1 // loop_footer
      %s16 = sadd.s32 1, %s12
    $region7: #{double_conv.1} parent=1 // loop_footer_branch
      %11 = sbr.rel target = $region3
    $region8: #{double_conv.1} parent=1 // loop_exit
      _

</llo_original>
